<compile_context>
chip_gen: v5e
topology: v5e:2x2
jax: 0.10.0
libtpu: 0.0.40
codegen_flags: <defaults>
</compile_context>

<pallas_src>
import functools
import math

import jax
import jax.numpy as jnp
from jax.experimental import pallas as pl
from jax.experimental.pallas import tpu as pltpu


def mha_kernel(x_ref, ctx_ref, wq_ref, bq_ref, wkv_ref, bkv_ref, wo_ref, bo_ref,
               o_ref, kv_ref, heads_ref, *, num_heads, d_head):
    qi = pl.program_id(1)
    D = num_heads * d_head

    # --- K/V projection: once per batch element, cached in VMEM -------------
    @pl.when(qi == 0)
    def _():
        ctx = ctx_ref[0]                                              # (S, D) bf16
        kv = jnp.dot(ctx, wkv_ref[...], preferred_element_type=jnp.float32)
        kv_ref[...] = (kv + bkv_ref[...]).astype(jnp.bfloat16)        # (S, 2D)

    # --- Q projection: one full-width matmul (scale folded into wq/bq) ------
    x = x_ref[0]                                                      # (TQ, D) bf16
    q_all = (jnp.dot(x, wq_ref[...], preferred_element_type=jnp.float32)
             + bq_ref[...]).astype(jnp.bfloat16)                      # (TQ, D)

    kv = kv_ref[...]                                                  # (S, 2D) bf16

    # --- Per-head attention (H is small & static -> unrolled at trace time) -
    for h in range(num_heads):
        lo = h * d_head
        q_h = q_all[:, lo:lo + d_head]                                # (TQ, dh)
        k_h = kv[:, lo:lo + d_head]                                   # (S, dh)
        v_h = kv[:, D + lo:D + lo + d_head]                           # (S, dh)

        s = jax.lax.dot_general(q_h, k_h, (((1,), (1,)), ((), ())),
                                preferred_element_type=jnp.float32)   # (TQ, S)

        # Softmax in f32; reciprocal on the EUP slot. (bf16 exp would roughly
        # double EUP throughput on v6e/v7x but costs denominator accuracy.)
        m = jnp.max(s, axis=-1, keepdims=True)
        p = jnp.exp(s - m)
        denom = jnp.sum(p, axis=-1, keepdims=True)
        p = (p * pl.reciprocal(denom, approx=True)).astype(jnp.bfloat16)

        oh = jnp.dot(p, v_h, preferred_element_type=jnp.float32)      # (TQ, dh)
        heads_ref[:, lo:lo + d_head] = oh.astype(jnp.bfloat16)

    # --- Output projection: single matmul with full contraction depth D -----
    out = jnp.dot(heads_ref[...], wo_ref[...], preferred_element_type=jnp.float32)
    o_ref[0] = (out + bo_ref[...]).astype(o_ref.dtype)


def _vmem_limit_bytes():
    """Per-generation VMEM budget: ~85% of physical, capped below 128 MiB parts."""
    try:
        cap = pltpu.get_tpu_info().vmem_capacity_bytes
    except Exception:
        cap = 64 * 1024 * 1024
    return max(32 * 1024 * 1024, min(int(cap * 0.85), 110 * 1024 * 1024))


def pack_params(params, *, num_heads):
    """One-time host-side packing: fold softmax scale into wq/bq, fuse wk|wv
    along the output dim, cast weights to bf16. Call once, reuse per forward."""
    D = params["wq"].shape[0]
    assert D % num_heads == 0
    scale = 1.0 / math.sqrt(D // num_heads)
    f32, bf16 = jnp.float32, jnp.bfloat16
    return {
        "wq": (params["wq"] * scale).astype(bf16),                          # (D, D)
        "bq": (params["bq"] * scale).reshape(1, D).astype(f32),             # (1, D)
        "wkv": jnp.concatenate([params["wk"], params["wv"]], 1).astype(bf16),   # (D, 2D)
        "bkv": jnp.concatenate([params["bk"], params["bv"]]).reshape(1, 2 * D).astype(f32),
        "wo": params["wo"].astype(bf16),                                    # (D, D)
        "bo": params["bo"].reshape(1, D).astype(f32),                       # (1, D)
    }


def multi_head_attention(x, context, packed, *, num_heads, q_tile=256, out_dtype=None):
    """Pallas implementation of the PyTorch MultiHeadAttention forward (mask=None)."""
    if context is None:
        context = x
    B, T, D = x.shape
    Bc, S, Dc = context.shape
    assert B == Bc and D == Dc
    assert D % num_heads == 0
    d_head = D // num_heads

    TQ = min(T, q_tile)
    assert T % TQ == 0, "T must be a multiple of the query tile size"
    nq = T // TQ

    out_dtype = out_dtype or x.dtype  # bf16 here would halve output HBM writeback

    bf16 = jnp.bfloat16
    x_b = x.astype(bf16)
    ctx_b = x_b if context is x else context.astype(bf16)

    grid = (B, nq)

    in_specs = [
        pl.BlockSpec((1, TQ, D), lambda b, q: (b, q, 0)),    # x (query tile)
        pl.BlockSpec((1, S, D), lambda b, q: (b, 0, 0)),     # context (per batch)
        pl.BlockSpec((D, D), lambda b, q: (0, 0)),           # wq (resident)
        pl.BlockSpec((1, D), lambda b, q: (0, 0)),           # bq
        pl.BlockSpec((D, 2 * D), lambda b, q: (0, 0)),       # wkv = [wk | wv]
        pl.BlockSpec((1, 2 * D), lambda b, q: (0, 0)),       # bkv
        pl.BlockSpec((D, D), lambda b, q: (0, 0)),           # wo (resident)
        pl.BlockSpec((1, D), lambda b, q: (0, 0)),           # bo
    ]
    out_spec = pl.BlockSpec((1, TQ, D), lambda b, q: (b, q, 0))

    kernel = functools.partial(mha_kernel, num_heads=num_heads, d_head=d_head)

    return pl.pallas_call(
        kernel,
        out_shape=jax.ShapeDtypeStruct((B, T, D), out_dtype),
        grid_spec=pltpu.PrefetchScalarGridSpec(
            num_scalar_prefetch=0,
            grid=grid,
            in_specs=in_specs,
            out_specs=out_spec,
            scratch_shapes=[
                pltpu.VMEM((S, 2 * D), jnp.bfloat16),   # cached K|V for current batch
                pltpu.VMEM((TQ, D), jnp.bfloat16),      # per-head output concat buffer
            ],
        ),
        compiler_params=pltpu.CompilerParams(
            # Query tiles must stay sequential per batch element (K/V cache);
            # batch axis is parallel so both TensorCores get work on v7x.
            dimension_semantics=("parallel", "arbitrary"),
            vmem_limit_bytes=_vmem_limit_bytes(),
        ),
    )(x_b, ctx_b, packed["wq"], packed["bq"], packed["wkv"], packed["bkv"],
      packed["wo"], packed["bo"])


def init_params(key, d_model):
    """Deterministic parameter init. Linear weights stored [in, out] (= W.T of PyTorch)."""
    names = ["wq", "wk", "wv", "wo"]
    keys = jax.random.split(key, 2 * len(names))
    params = {}
    scale = 1.0 / math.sqrt(d_model)
    for i, name in enumerate(names):
        params[name] = scale * jax.random.normal(keys[2 * i], (d_model, d_model),
                                                 dtype=jnp.float32)
        params["b" + name[1]] = scale * jax.random.normal(keys[2 * i + 1], (d_model,),
                                                          dtype=jnp.float32)
    return params


def reference_forward(x, context, params, *, num_heads):
    """Pure-JAX reference matching the PyTorch module (mask=None)."""
    B, T, D = x.shape
    S = context.shape[1]
    dh = D // num_heads
    Q = x @ params["wq"] + params["bq"]
    K = context @ params["wk"] + params["bk"]
    V = context @ params["wv"] + params["bv"]
    Q = Q.reshape(B, T, num_heads, dh).transpose(0, 2, 1, 3)
    K = K.reshape(B, S, num_heads, dh).transpose(0, 2, 1, 3)
    V = V.reshape(B, S, num_heads, dh).transpose(0, 2, 1, 3)
    s = jnp.einsum("bhtd,bhsd->bhts", Q, K) / math.sqrt(dh)
    a = jax.nn.softmax(s, axis=-1)
    o = jnp.einsum("bhts,bhsd->bhtd", a, V)
    o = o.transpose(0, 2, 1, 3).reshape(B, T, D)
    return o @ params["wo"] + params["bo"]


if __name__ == "__main__":
    B, T, S = 2, 16, 8
    D_MODEL, NUM_HEADS = 32, 4

    key = jax.random.PRNGKey(0)
    kx, kc, kp = jax.random.split(key, 3)
    x = jax.random.normal(kx, (B, T, D_MODEL), dtype=jnp.float32)
    ctx = jax.random.normal(kc, (B, S, D_MODEL), dtype=jnp.float32)
    params = init_params(kp, D_MODEL)
    packed = pack_params(params, num_heads=NUM_HEADS)

    # q_tile=8 forces multiple query tiles so the per-batch K/V cache path
    # (project at tile 0, reuse afterwards) is exercised even at this tiny T.
    out_self = multi_head_attention(x, None, packed, num_heads=NUM_HEADS, q_tile=8)
    out_cross = multi_head_attention(x, ctx, packed, num_heads=NUM_HEADS, q_tile=8)
    out_self = jax.block_until_ready(out_self)
    out_cross = jax.block_until_ready(out_cross)

    # Reference with bf16-rounded inputs/weights so the comparison isolates the
    # kernel's bf16-matmul / approx-reciprocal error (tolerance loosened for bf16).
    def _rb(v):
        return v.astype(jnp.bfloat16).astype(jnp.float32)

    ref_params = {k: (_rb(v) if k.startswith("w") else v) for k, v in params.items()}
    x_r, ctx_r = _rb(x), _rb(ctx)
    ref_self = reference_forward(x_r, x_r, ref_params, num_heads=NUM_HEADS)
    ref_cross = reference_forward(x_r, ctx_r, ref_params, num_heads=NUM_HEADS)

    assert out_self.shape == (B, T, D_MODEL)
    assert out_cross.shape == (B, T, D_MODEL)
    assert jnp.allclose(out_self, ref_self, atol=1e-1, rtol=1e-1), (
        f"self-attn max abs diff = {jnp.max(jnp.abs(out_self - ref_self))}")
    assert jnp.allclose(out_cross, ref_cross, atol=1e-1, rtol=1e-1), (
        f"cross-attn max abs diff = {jnp.max(jnp.abs(out_cross - ref_cross))}")

    print("KERNEL_OK")
</pallas_src>

<mosaic_0001>
module attributes {stable_mosaic.version = 11 : i64} {
  func.func @mha_kernel(%arg0: i32, %arg1: i32, %arg2: memref<1x8x32xbf16, #tpu.memory_space<vmem>>, %arg3: memref<1x16x32xbf16, #tpu.memory_space<vmem>>, %arg4: memref<32x32xbf16, #tpu.memory_space<vmem>>, %arg5: memref<1x32xf32, #tpu.memory_space<vmem>>, %arg6: memref<32x64xbf16, #tpu.memory_space<vmem>>, %arg7: memref<1x64xf32, #tpu.memory_space<vmem>>, %arg8: memref<32x32xbf16, #tpu.memory_space<vmem>>, %arg9: memref<1x32xf32, #tpu.memory_space<vmem>>, %arg10: memref<1x8x32xf32, #tpu.memory_space<vmem>>, %arg11: memref<16x64xbf16, #tpu.memory_space<vmem>>, %arg12: memref<8x32xbf16, #tpu.memory_space<vmem>>) attributes {dimension_semantics = [#tpu.dimension_semantics<parallel>, #tpu.dimension_semantics<arbitrary>], iteration_bounds = array<i64: 2, 2>, scalar_prefetch = 0 : i64, scratch_operands = 2 : i64, tpu.core_type = #tpu.core_type<tc>, window_params = [{transform_indices = @transform_0, window_bounds = array<i64: 1, 8, 32>}, {transform_indices = @transform_1, window_bounds = array<i64: 1, 16, 32>}, {pipeline_mode = #tpu.pipeline_mode<synchronous>, transform_indices = @transform_2, window_bounds = array<i64: 32, 32>}, {pipeline_mode = #tpu.pipeline_mode<synchronous>, transform_indices = @transform_3, window_bounds = array<i64: 1, 32>}, {pipeline_mode = #tpu.pipeline_mode<synchronous>, transform_indices = @transform_4, window_bounds = array<i64: 32, 64>}, {pipeline_mode = #tpu.pipeline_mode<synchronous>, transform_indices = @transform_5, window_bounds = array<i64: 1, 64>}, {pipeline_mode = #tpu.pipeline_mode<synchronous>, transform_indices = @transform_6, window_bounds = array<i64: 32, 32>}, {pipeline_mode = #tpu.pipeline_mode<synchronous>, transform_indices = @transform_7, window_bounds = array<i64: 1, 32>}, {transform_indices = @transform_8, window_bounds = array<i64: 1, 8, 32>}]} {
    %c0_i32 = arith.constant 0 : i32
    %0 = arith.cmpi eq, %arg1, %c0_i32 : i32
    %1 = arith.extui %0 : i1 to i32
    %c0_i32_0 = arith.constant 0 : i32
    %2 = arith.cmpi ne, %1, %c0_i32_0 : i32
    scf.if %2 {
      %c0_40 = arith.constant 0 : index
      %c0_41 = arith.constant 0 : index
      %c0_42 = arith.constant 0 : index
      %93 = vector.load %arg3[%c0_40, %c0_41, %c0_42] : memref<1x16x32xbf16, #tpu.memory_space<vmem>>, vector<1x16x32xbf16>
      %94 = vector.shape_cast %93 : vector<1x16x32xbf16> to vector<16x32xbf16>
      %c0_43 = arith.constant 0 : index
      %c0_44 = arith.constant 0 : index
      %95 = vector.load %arg6[%c0_43, %c0_44] : memref<32x64xbf16, #tpu.memory_space<vmem>>, vector<32x64xbf16>
      %cst_45 = arith.constant dense<0.000000e+00> : vector<16x64xf32>
      %96 = tpu.matmul %94, %95, %cst_45 {dimension_numbers = #tpu.dot_dimension_numbers<[1], [0], [0], [1], [0, 0, 1, 1], [], []>} : vector<16x32xbf16>, vector<32x64xbf16>, vector<16x64xf32> -> vector<16x64xf32>
      %c0_46 = arith.constant 0 : index
      %c0_47 = arith.constant 0 : index
      %97 = vector.load %arg7[%c0_46, %c0_47] : memref<1x64xf32, #tpu.memory_space<vmem>>, vector<1x64xf32>
      %98 = vector.broadcast %97 : vector<1x64xf32> to vector<16x64xf32>
      %99 = arith.addf %96, %98 : vector<16x64xf32>
      %100 = arith.truncf %99 : vector<16x64xf32> to vector<16x64xbf16>
      %c0_48 = arith.constant 0 : index
      %c0_49 = arith.constant 0 : index
      %101 = vector.load %arg11[%c0_48, %c0_49] : memref<16x64xbf16, #tpu.memory_space<vmem>>, vector<16x64xbf16>
      tpu.vector_store %arg11[%c0_48, %c0_49], %100 {strides = array<i32>} : memref<16x64xbf16, #tpu.memory_space<vmem>>, vector<16x64xbf16>,
    } else {
    }
    %c0 = arith.constant 0 : index
    %c0_1 = arith.constant 0 : index
    %c0_2 = arith.constant 0 : index
    %3 = vector.load %arg2[%c0, %c0_1, %c0_2] : memref<1x8x32xbf16, #tpu.memory_space<vmem>>, vector<1x8x32xbf16>
    %4 = vector.shape_cast %3 : vector<1x8x32xbf16> to vector<8x32xbf16>
    %c0_3 = arith.constant 0 : index
    %c0_4 = arith.constant 0 : index
    %5 = vector.load %arg4[%c0_3, %c0_4] : memref<32x32xbf16, #tpu.memory_space<vmem>>, vector<32x32xbf16>
    %cst = arith.constant dense<0.000000e+00> : vector<8x32xf32>
    %6 = tpu.matmul %4, %5, %cst {dimension_numbers = #tpu.dot_dimension_numbers<[1], [0], [0], [1], [0, 0, 1, 1], [], []>} : vector<8x32xbf16>, vector<32x32xbf16>, vector<8x32xf32> -> vector<8x32xf32>
    %c0_5 = arith.constant 0 : index
    %c0_6 = arith.constant 0 : index
    %7 = vector.load %arg5[%c0_5, %c0_6] : memref<1x32xf32, #tpu.memory_space<vmem>>, vector<1x32xf32>
    %8 = vector.broadcast %7 : vector<1x32xf32> to vector<8x32xf32>
    %9 = arith.addf %6, %8 : vector<8x32xf32>
    %10 = arith.truncf %9 : vector<8x32xf32> to vector<8x32xbf16>
    %c0_7 = arith.constant 0 : index
    %c0_8 = arith.constant 0 : index
    %11 = vector.load %arg11[%c0_7, %c0_8] : memref<16x64xbf16, #tpu.memory_space<vmem>>, vector<16x64xbf16>
    %12 = vector.extract_strided_slice %10 {offsets = [0, 0], sizes = [8, 8], strides = [1, 1]} : vector<8x32xbf16> to vector<8x8xbf16>
    %13 = vector.extract_strided_slice %11 {offsets = [0, 0], sizes = [16, 8], strides = [1, 1]} : vector<16x64xbf16> to vector<16x8xbf16>
    %14 = vector.extract_strided_slice %11 {offsets = [0, 32], sizes = [16, 8], strides = [1, 1]} : vector<16x64xbf16> to vector<16x8xbf16>
    %cst_9 = arith.constant dense<0.000000e+00> : vector<8x16xf32>
    %15 = tpu.matmul %12, %13, %cst_9 {dimension_numbers = #tpu.dot_dimension_numbers<[1], [1], [0], [0], [0, 0, 1, 0], [], []>} : vector<8x8xbf16>, vector<16x8xbf16>, vector<8x16xf32> -> vector<8x16xf32>
    %cst_10 = arith.constant dense<0xFF800000> : vector<8xf32>
    %16 = vector.multi_reduction <maximumf>, %15, %cst_10 [1] : vector<8x16xf32> to vector<8xf32>
    %17 = vector.shape_cast %16 : vector<8xf32> to vector<8x1xf32>
    %18 = vector.broadcast %17 : vector<8x1xf32> to vector<8x16xf32>
    %19 = arith.subf %15, %18 : vector<8x16xf32>
    %20 = math.exp %19 : vector<8x16xf32>
    %cst_11 = arith.constant dense<0.000000e+00> : vector<8xf32>
    %21 = vector.multi_reduction <add>, %20, %cst_11 [1] : vector<8x16xf32> to vector<8xf32>
    %22 = vector.shape_cast %21 : vector<8xf32> to vector<8x1xf32>
    %23 = tpu.reciprocal %22 {approx = true} : vector<8x1xf32> -> vector<8x1xf32>
    %24 = vector.broadcast %23 : vector<8x1xf32> to vector<8x16xf32>
    %25 = arith.mulf %20, %24 : vector<8x16xf32>
    %26 = arith.truncf %25 : vector<8x16xf32> to vector<8x16xbf16>
    %cst_12 = arith.constant dense<0.000000e+00> : vector<8x8xf32>
    %27 = tpu.matmul %26, %14, %cst_12 {dimension_numbers = #tpu.dot_dimension_numbers<[1], [0], [0], [1], [0, 0, 1, 1], [], []>} : vector<8x16xbf16>, vector<16x8xbf16>, vector<8x8xf32> -> vector<8x8xf32>
    %28 = arith.truncf %27 : vector<8x8xf32> to vector<8x8xbf16>
    %c0_13 = arith.constant 0 : index
    %c0_14 = arith.constant 0 : index
    %29 = vector.load %arg12[%c0_13, %c0_14] : memref<8x32xbf16, #tpu.memory_space<vmem>>, vector<8x8xbf16>
    tpu.vector_store %arg12[%c0_13, %c0_14], %28 {strides = array<i32>} : memref<8x32xbf16, #tpu.memory_space<vmem>>, vector<8x8xbf16>,
    %30 = vector.extract_strided_slice %10 {offsets = [0, 8], sizes = [8, 8], strides = [1, 1]} : vector<8x32xbf16> to vector<8x8xbf16>
    %31 = vector.extract_strided_slice %11 {offsets = [0, 8], sizes = [16, 8], strides = [1, 1]} : vector<16x64xbf16> to vector<16x8xbf16>
    %32 = vector.extract_strided_slice %11 {offsets = [0, 40], sizes = [16, 8], strides = [1, 1]} : vector<16x64xbf16> to vector<16x8xbf16>
    %cst_15 = arith.constant dense<0.000000e+00> : vector<8x16xf32>
    %33 = tpu.matmul %30, %31, %cst_15 {dimension_numbers = #tpu.dot_dimension_numbers<[1], [1], [0], [0], [0, 0, 1, 0], [], []>} : vector<8x8xbf16>, vector<16x8xbf16>, vector<8x16xf32> -> vector<8x16xf32>
    %cst_16 = arith.constant dense<0xFF800000> : vector<8xf32>
    %34 = vector.multi_reduction <maximumf>, %33, %cst_16 [1] : vector<8x16xf32> to vector<8xf32>
    %35 = vector.shape_cast %34 : vector<8xf32> to vector<8x1xf32>
    %36 = vector.broadcast %35 : vector<8x1xf32> to vector<8x16xf32>
    %37 = arith.subf %33, %36 : vector<8x16xf32>
    %38 = math.exp %37 : vector<8x16xf32>
    %cst_17 = arith.constant dense<0.000000e+00> : vector<8xf32>
    %39 = vector.multi_reduction <add>, %38, %cst_17 [1] : vector<8x16xf32> to vector<8xf32>
    %40 = vector.shape_cast %39 : vector<8xf32> to vector<8x1xf32>
    %41 = tpu.reciprocal %40 {approx = true} : vector<8x1xf32> -> vector<8x1xf32>
    %42 = vector.broadcast %41 : vector<8x1xf32> to vector<8x16xf32>
    %43 = arith.mulf %38, %42 : vector<8x16xf32>
    %44 = arith.truncf %43 : vector<8x16xf32> to vector<8x16xbf16>
    %cst_18 = arith.constant dense<0.000000e+00> : vector<8x8xf32>
    %45 = tpu.matmul %44, %32, %cst_18 {dimension_numbers = #tpu.dot_dimension_numbers<[1], [0], [0], [1], [0, 0, 1, 1], [], []>} : vector<8x16xbf16>, vector<16x8xbf16>, vector<8x8xf32> -> vector<8x8xf32>
    %46 = arith.truncf %45 : vector<8x8xf32> to vector<8x8xbf16>
    %c0_19 = arith.constant 0 : index
    %c8 = arith.constant 8 : index
    %47 = vector.load %arg12[%c0_19, %c8] : memref<8x32xbf16, #tpu.memory_space<vmem>>, vector<8x8xbf16>
    tpu.vector_store %arg12[%c0_19, %c8], %46 {strides = array<i32>} : memref<8x32xbf16, #tpu.memory_space<vmem>>, vector<8x8xbf16>,
    %48 = vector.extract_strided_slice %10 {offsets = [0, 16], sizes = [8, 8], strides = [1, 1]} : vector<8x32xbf16> to vector<8x8xbf16>
    %49 = vector.extract_strided_slice %11 {offsets = [0, 16], sizes = [16, 8], strides = [1, 1]} : vector<16x64xbf16> to vector<16x8xbf16>
    %50 = vector.extract_strided_slice %11 {offsets = [0, 48], sizes = [16, 8], strides = [1, 1]} : vector<16x64xbf16> to vector<16x8xbf16>
    %cst_20 = arith.constant dense<0.000000e+00> : vector<8x16xf32>
    %51 = tpu.matmul %48, %49, %cst_20 {dimension_numbers = #tpu.dot_dimension_numbers<[1], [1], [0], [0], [0, 0, 1, 0], [], []>} : vector<8x8xbf16>, vector<16x8xbf16>, vector<8x16xf32> -> vector<8x16xf32>
    %cst_21 = arith.constant dense<0xFF800000> : vector<8xf32>
    %52 = vector.multi_reduction <maximumf>, %51, %cst_21 [1] : vector<8x16xf32> to vector<8xf32>
    %53 = vector.shape_cast %52 : vector<8xf32> to vector<8x1xf32>
    %54 = vector.broadcast %53 : vector<8x1xf32> to vector<8x16xf32>
    %55 = arith.subf %51, %54 : vector<8x16xf32>
    %56 = math.exp %55 : vector<8x16xf32>
    %cst_22 = arith.constant dense<0.000000e+00> : vector<8xf32>
    %57 = vector.multi_reduction <add>, %56, %cst_22 [1] : vector<8x16xf32> to vector<8xf32>
    %58 = vector.shape_cast %57 : vector<8xf32> to vector<8x1xf32>
    %59 = tpu.reciprocal %58 {approx = true} : vector<8x1xf32> -> vector<8x1xf32>
    %60 = vector.broadcast %59 : vector<8x1xf32> to vector<8x16xf32>
    %61 = arith.mulf %56, %60 : vector<8x16xf32>
    %62 = arith.truncf %61 : vector<8x16xf32> to vector<8x16xbf16>
    %cst_23 = arith.constant dense<0.000000e+00> : vector<8x8xf32>
    %63 = tpu.matmul %62, %50, %cst_23 {dimension_numbers = #tpu.dot_dimension_numbers<[1], [0], [0], [1], [0, 0, 1, 1], [], []>} : vector<8x16xbf16>, vector<16x8xbf16>, vector<8x8xf32> -> vector<8x8xf32>
    %64 = arith.truncf %63 : vector<8x8xf32> to vector<8x8xbf16>
    %c0_24 = arith.constant 0 : index
    %c16 = arith.constant 16 : index
    %65 = vector.load %arg12[%c0_24, %c16] : memref<8x32xbf16, #tpu.memory_space<vmem>>, vector<8x8xbf16>
    tpu.vector_store %arg12[%c0_24, %c16], %64 {strides = array<i32>} : memref<8x32xbf16, #tpu.memory_space<vmem>>, vector<8x8xbf16>,
    %66 = vector.extract_strided_slice %10 {offsets = [0, 24], sizes = [8, 8], strides = [1, 1]} : vector<8x32xbf16> to vector<8x8xbf16>
    %67 = vector.extract_strided_slice %11 {offsets = [0, 24], sizes = [16, 8], strides = [1, 1]} : vector<16x64xbf16> to vector<16x8xbf16>
    %68 = vector.extract_strided_slice %11 {offsets = [0, 56], sizes = [16, 8], strides = [1, 1]} : vector<16x64xbf16> to vector<16x8xbf16>
    %cst_25 = arith.constant dense<0.000000e+00> : vector<8x16xf32>
    %69 = tpu.matmul %66, %67, %cst_25 {dimension_numbers = #tpu.dot_dimension_numbers<[1], [1], [0], [0], [0, 0, 1, 0], [], []>} : vector<8x8xbf16>, vector<16x8xbf16>, vector<8x16xf32> -> vector<8x16xf32>
    %cst_26 = arith.constant dense<0xFF800000> : vector<8xf32>
    %70 = vector.multi_reduction <maximumf>, %69, %cst_26 [1] : vector<8x16xf32> to vector<8xf32>
    %71 = vector.shape_cast %70 : vector<8xf32> to vector<8x1xf32>
    %72 = vector.broadcast %71 : vector<8x1xf32> to vector<8x16xf32>
    %73 = arith.subf %69, %72 : vector<8x16xf32>
    %74 = math.exp %73 : vector<8x16xf32>
    %cst_27 = arith.constant dense<0.000000e+00> : vector<8xf32>
    %75 = vector.multi_reduction <add>, %74, %cst_27 [1] : vector<8x16xf32> to vector<8xf32>
    %76 = vector.shape_cast %75 : vector<8xf32> to vector<8x1xf32>
    %77 = tpu.reciprocal %76 {approx = true} : vector<8x1xf32> -> vector<8x1xf32>
    %78 = vector.broadcast %77 : vector<8x1xf32> to vector<8x16xf32>
    %79 = arith.mulf %74, %78 : vector<8x16xf32>
    %80 = arith.truncf %79 : vector<8x16xf32> to vector<8x16xbf16>
    %cst_28 = arith.constant dense<0.000000e+00> : vector<8x8xf32>
    %81 = tpu.matmul %80, %68, %cst_28 {dimension_numbers = #tpu.dot_dimension_numbers<[1], [0], [0], [1], [0, 0, 1, 1], [], []>} : vector<8x16xbf16>, vector<16x8xbf16>, vector<8x8xf32> -> vector<8x8xf32>
    %82 = arith.truncf %81 : vector<8x8xf32> to vector<8x8xbf16>
    %c0_29 = arith.constant 0 : index
    %c24 = arith.constant 24 : index
    %83 = vector.load %arg12[%c0_29, %c24] : memref<8x32xbf16, #tpu.memory_space<vmem>>, vector<8x8xbf16>
    tpu.vector_store %arg12[%c0_29, %c24], %82 {strides = array<i32>} : memref<8x32xbf16, #tpu.memory_space<vmem>>, vector<8x8xbf16>,
    %c0_30 = arith.constant 0 : index
    %c0_31 = arith.constant 0 : index
    %84 = vector.load %arg12[%c0_30, %c0_31] : memref<8x32xbf16, #tpu.memory_space<vmem>>, vector<8x32xbf16>
    %c0_32 = arith.constant 0 : index
    %c0_33 = arith.constant 0 : index
    %85 = vector.load %arg8[%c0_32, %c0_33] : memref<32x32xbf16, #tpu.memory_space<vmem>>, vector<32x32xbf16>
    %cst_34 = arith.constant dense<0.000000e+00> : vector<8x32xf32>
    %86 = tpu.matmul %84, %85, %cst_34 {dimension_numbers = #tpu.dot_dimension_numbers<[1], [0], [0], [1], [0, 0, 1, 1], [], []>} : vector<8x32xbf16>, vector<32x32xbf16>, vector<8x32xf32> -> vector<8x32xf32>
    %c0_35 = arith.constant 0 : index
    %c0_36 = arith.constant 0 : index
    %87 = vector.load %arg9[%c0_35, %c0_36] : memref<1x32xf32, #tpu.memory_space<vmem>>, vector<1x32xf32>
    %88 = vector.broadcast %87 : vector<1x32xf32> to vector<8x32xf32>
    %89 = arith.addf %86, %88 : vector<8x32xf32>
    %c0_37 = arith.constant 0 : index
    %c0_38 = arith.constant 0 : index
    %c0_39 = arith.constant 0 : index
    %90 = vector.load %arg10[%c0_37, %c0_38, %c0_39] : memref<1x8x32xf32, #tpu.memory_space<vmem>>, vector<1x8x32xf32>
    %91 = vector.shape_cast %90 : vector<1x8x32xf32> to vector<8x32xf32>
    %92 = vector.shape_cast %89 : vector<8x32xf32> to vector<1x8x32xf32>
    tpu.vector_store %arg10[%c0_37, %c0_38, %c0_39], %92 {strides = array<i32>} : memref<1x8x32xf32, #tpu.memory_space<vmem>>, vector<1x8x32xf32>,
    return
  }
  func.func @transform_0(%arg0: i32, %arg1: i32) -> (i32, i32, i32) {
    %c0_i32 = arith.constant 0 : i32
    %c0_i32_0 = arith.constant 0 : i32
    return %arg0, %arg1, %c0_i32 : i32, i32, i32
  }
  func.func @transform_1(%arg0: i32, %arg1: i32) -> (i32, i32, i32) {
    %c0_i32 = arith.constant 0 : i32
    %c0_i32_0 = arith.constant 0 : i32
    %c0_i32_1 = arith.constant 0 : i32
    return %arg0, %c0_i32, %c0_i32_0 : i32, i32, i32
  }
  func.func @transform_2(%arg0: i32, %arg1: i32) -> (i32, i32) {
    %c0_i32 = arith.constant 0 : i32
    %c0_i32_0 = arith.constant 0 : i32
    %c0_i32_1 = arith.constant 0 : i32
    return %c0_i32, %c0_i32_0 : i32, i32
  }
  func.func @transform_3(%arg0: i32, %arg1: i32) -> (i32, i32) {
    %c0_i32 = arith.constant 0 : i32
    %c0_i32_0 = arith.constant 0 : i32
    %c0_i32_1 = arith.constant 0 : i32
    return %c0_i32, %c0_i32_0 : i32, i32
  }
  func.func @transform_4(%arg0: i32, %arg1: i32) -> (i32, i32) {
    %c0_i32 = arith.constant 0 : i32
    %c0_i32_0 = arith.constant 0 : i32
    %c0_i32_1 = arith.constant 0 : i32
    return %c0_i32, %c0_i32_0 : i32, i32
  }
  func.func @transform_5(%arg0: i32, %arg1: i32) -> (i32, i32) {
    %c0_i32 = arith.constant 0 : i32
    %c0_i32_0 = arith.constant 0 : i32
    %c0_i32_1 = arith.constant 0 : i32
    return %c0_i32, %c0_i32_0 : i32, i32
  }
  func.func @transform_6(%arg0: i32, %arg1: i32) -> (i32, i32) {
    %c0_i32 = arith.constant 0 : i32
    %c0_i32_0 = arith.constant 0 : i32
    %c0_i32_1 = arith.constant 0 : i32
    return %c0_i32, %c0_i32_0 : i32, i32
  }
  func.func @transform_7(%arg0: i32, %arg1: i32) -> (i32, i32) {
    %c0_i32 = arith.constant 0 : i32
    %c0_i32_0 = arith.constant 0 : i32
    %c0_i32_1 = arith.constant 0 : i32
    return %c0_i32, %c0_i32_0 : i32, i32
  }
  func.func @transform_8(%arg0: i32, %arg1: i32) -> (i32, i32, i32) {
    %c0_i32 = arith.constant 0 : i32
    %c0_i32_0 = arith.constant 0 : i32
    return %arg0, %arg1, %c0_i32 : i32, i32, i32
  }
}

</mosaic_0001>

<llo_original>
// kernel: tpu_custom_call.1
$region0: #{tpu_custom_call.1}
  #allocation0 [shape = 'u32[]', space=smem, size = 0x4, offset = 0x4, fixed_abs, tag = 'smem constant byte address 0x4 - core index']
  #allocation1 [shape = 'u32[72,128]{1,0:T(1,128)}', space=vmem, size = 0x9000, scoped, tag = 'internal scratch']
  #allocation2 [shape = 'bf16[16,64]{1,0:T(8,128)(2,1)}', space=vmem, size = 0x1000, scoped, tag = 'scratch operand']
  #allocation3 [shape = 'bf16[8,32]{1,0:T(8,128)(2,1)}', space=vmem, size = 0x800, scoped, tag = 'scratch operand']
  %s0 = inlined_call_operand.hbm [shape: bf16[2,16,32], index: 0, kind: input, shape index: {}]
  %s1 = inlined_call_operand.hbm [shape: bf16[2,16,32], index: 1, kind: input, shape index: {}]
  %s2 = inlined_call_operand.hbm [shape: bf16[32,32], index: 2, kind: input, shape index: {}]
  %s3 = inlined_call_operand.vmem [shape: f32[1,32], index: 3, kind: input, shape index: {}]
  %s4 = inlined_call_operand.hbm [shape: bf16[32,64], index: 4, kind: input, shape index: {}]
  %s5 = inlined_call_operand.vmem [shape: f32[1,64], index: 5, kind: input, shape index: {}]
  %s6 = inlined_call_operand.hbm [shape: bf16[32,32], index: 6, kind: input, shape index: {}]
  %s7 = inlined_call_operand.vmem [shape: f32[1,32], index: 7, kind: input, shape index: {}]
  %s8 = inlined_call_operand.hbm [shape: f32[2,16,32], index: 8, kind: output, shape index: {}]
  %s9 = sld [smem:[#allocation0]]
  $region89: #{tpu_custom_call.1} parent=0
    _
  %s11 = ssub.s32 1, %s9
  %s12 = scalar_select 0, %s11, %s9
  $region1: #{tpu_custom_call.1} parent=0
    #allocation4 [shape = 'u8[4096]{0}', space=vmem, size = 0x1000, scoped, tag = 'input window, operand 0']
    #allocation5 [shape = 's32[2]{0}', space=sflag, size = 0x8, scoped, tag = 'scoped memory for tpu_custom_call.1']
    #allocation6 [shape = 's32[2]{0}', space=sflag, size = 0x8, scoped, tag = 'scoped memory for tpu_custom_call.1']
    #allocation7 [shape = 'u8[8192]{0}', space=vmem, size = 0x2000, scoped, tag = 'input window, operand 1']
    #allocation8 [shape = 's32[2]{0}', space=sflag, size = 0x8, scoped, tag = 'scoped memory for tpu_custom_call.1']
    #allocation9 [shape = 'u8[8192]{0}', space=vmem, size = 0x2000, scoped, tag = 'input window, operand 2, single buffered']
    #allocation10 [shape = 'u8[8192]{0}', space=vmem, size = 0x2000, scoped, tag = 'input window, operand 4, single buffered']
    #allocation11 [shape = 's32[1]{0}', space=sflag, size = 0x4, scoped, tag = 'scoped memory for tpu_custom_call.1']
    #allocation12 [shape = 'u8[8192]{0}', space=vmem, size = 0x2000, scoped, tag = 'input window, operand 6, single buffered']
    #allocation13 [shape = 'u8[8192]{0}', space=vmem, size = 0x2000, scoped, tag = 'output window, operand 0']
    %13 = vsyncpa [#allocation5], 0
    %s14 = scalar_lea.sflag [#allocation5], 1
    %15 = vsyncpa %s14, 0
    %16 = vsyncpa [#allocation8], 0
    %s17 = scalar_lea.sflag [#allocation8], 1
    %18 = vsyncpa %s17, 0
    %19 = vsyncpa [#allocation11], 0
    %20 = vsyncpa [#allocation6], 0
    %s21 = scalar_lea.sflag [#allocation6], 1
    %22 = vsyncpa %s21, 0
    loop: start=0, step=1, limit=6
    $region2: #{tpu_custom_call.1} parent=1 // loop_pre_header
      _
    $region3: #{tpu_custom_call.1} parent=1 // loop_header
      %s24 = sphi 0, %s28
      %p25 = scmp.ge.s32.totalorder %s24, 6
      %s31 = sphi 0, %s43
      %s32 = sphi 0, %s39
      %s33 = sphi 0, %s31
      %s34 = sphi 0, %s32
      %s35 = sphi 0, %s33
      %s36 = sphi 0, %s34
      %s48 = sphi 0, %s50
      %s51 = sphi 0, %s48
      %s52 = sphi 0, %s51
      %s68 = sphi 0, %s52
      %s74 = sphi 0, %s76
      %s77 = sphi 0, %s74
      %s78 = sphi 0, %s77
      %s94 = sphi 0, %s78
      %s98 = sphi 0, %s98
      %s100 = sphi 0, %s98
      %s101 = sphi 0, %s100
      %s115 = sphi 0, %s101
      %s119 = sphi 0, %s119
      %s121 = sphi 0, %s119
      %s122 = sphi 0, %s121
      %s136 = sphi 0, %s122
      %s140 = sphi 0, %s140
      %s142 = sphi 0, %s140
      %s143 = sphi 0, %s142
      %s157 = sphi 0, %s143
      %s161 = sphi 0, %s161
      %s163 = sphi 0, %s161
      %s164 = sphi 0, %s163
      %s178 = sphi 0, %s164
      %s182 = sphi 0, %s182
      %s184 = sphi 0, %s182
      %s185 = sphi 0, %s184
      %s199 = sphi 0, %s185
      %s203 = sphi 0, %s203
      %s205 = sphi 0, %s203
      %s206 = sphi 0, %s205
      %s220 = sphi 0, %s206
      %s228 = sphi 0, %s230
      %s231 = sphi 0, %s228
      %s232 = sphi 0, %s231
      %s248 = sphi 0, %s232
    $region4: #{tpu_custom_call.1} parent=1 // loop_header_branch
      %27 = sbr.rel (%p25) target = $region8
    $region5: #{tpu_custom_call.1} parent=1 // loop_body
      %s29 = ssub.s32 %s24, 1
      %s30 = ssub.s32 %s24, 2
      %s37 = sadd.s32 1, %s32
      %p38 = scmp.ge.s32.totalorder %s37, 2
      %s39 = scalar_select %p38, 0, %s37
      %s40 = sadd.s32 1, %s31
      %s41 = scalar_select %p38, %s40, %s31
      %p42 = scmp.ge.s32.totalorder %s41, 2
      %s43 = scalar_select %p42, 0, %s41
      %s44 = ssub.s32 %s31, %s43
      %s45 = ssub.s32 %s32, %s39
      %s46 = sor.u32 %s44, %s45
      %p47 = scmp.eq.s32.totalorder %s46, 0
      %s49 = sadd.s32 %s48, 1
      %s50 = scalar_select %p47, %s48, %s49
      %p53 = pneg %p47
      %p54 = scmp.eq.s32.totalorder %s24, 3
      %p55 = por %p53, %p54
      %p56 = scmp.ne.s32.totalorder %s48, %s51
      %p57 = scmp.eq.s32.totalorder %s24, 0
      %p58 = por %p56, %p57
      %p59 = scmp.ne.s32.totalorder %s48, %s51
      %p60 = scmp.eq.s32.totalorder %s29, 3
      %p61 = por %p59, %p60
      %p62 = scmp.ne.s32.totalorder %s51, %s52
      %p63 = scmp.eq.s32.totalorder %s29, 0
      %p64 = por %p62, %p63
      %p65 = scmp.ne.s32.totalorder %s51, %s52
      %p66 = scmp.eq.s32.totalorder %s30, 3
      %p67 = por %p65, %p66
      %p69 = scmp.ne.s32.totalorder %s52, %s68
      %p70 = scmp.eq.s32.totalorder %s30, 0
      %p71 = por %p69, %p70
      %s72 = ssub.s32 %s31, %s43
      %p73 = scmp.eq.s32.totalorder %s72, 0
      %s75 = sadd.s32 %s74, 1
      %s76 = scalar_select %p73, %s74, %s75
      %p79 = pneg %p73
      %p80 = scmp.eq.s32.totalorder %s24, 3
      %p81 = por %p79, %p80
      %p82 = scmp.ne.s32.totalorder %s74, %s77
      %p83 = scmp.eq.s32.totalorder %s24, 0
      %p84 = por %p82, %p83
      %p85 = scmp.ne.s32.totalorder %s74, %s77
      %p86 = scmp.eq.s32.totalorder %s29, 3
      %p87 = por %p85, %p86
      %p88 = scmp.ne.s32.totalorder %s77, %s78
      %p89 = scmp.eq.s32.totalorder %s29, 0
      %p90 = por %p88, %p89
      %p91 = scmp.ne.s32.totalorder %s77, %s78
      %p92 = scmp.eq.s32.totalorder %s30, 3
      %p93 = por %p91, %p92
      %p95 = scmp.ne.s32.totalorder %s78, %s94
      %p96 = scmp.eq.s32.totalorder %s30, 0
      %p97 = por %p95, %p96
      %s99 = sadd.s32 %s98, 1
      %p102 = scmp.eq.s32.totalorder %s24, 3
      %p103 = scmp.ne.s32.totalorder %s98, %s100
      %p104 = scmp.eq.s32.totalorder %s24, 0
      %p105 = por %p103, %p104
      %p106 = scmp.ne.s32.totalorder %s98, %s100
      %p107 = scmp.eq.s32.totalorder %s29, 3
      %p108 = por %p106, %p107
      %p109 = scmp.ne.s32.totalorder %s100, %s101
      %p110 = scmp.eq.s32.totalorder %s29, 0
      %p111 = por %p109, %p110
      %p112 = scmp.ne.s32.totalorder %s100, %s101
      %p113 = scmp.eq.s32.totalorder %s30, 3
      %p114 = por %p112, %p113
      %p116 = scmp.ne.s32.totalorder %s101, %s115
      %p117 = scmp.eq.s32.totalorder %s30, 0
      %p118 = por %p116, %p117
      %s120 = sadd.s32 %s119, 1
      %p123 = scmp.eq.s32.totalorder %s24, 3
      %p124 = scmp.ne.s32.totalorder %s119, %s121
      %p125 = scmp.eq.s32.totalorder %s24, 0
      %p126 = por %p124, %p125
      %p127 = scmp.ne.s32.totalorder %s119, %s121
      %p128 = scmp.eq.s32.totalorder %s29, 3
      %p129 = por %p127, %p128
      %p130 = scmp.ne.s32.totalorder %s121, %s122
      %p131 = scmp.eq.s32.totalorder %s29, 0
      %p132 = por %p130, %p131
      %p133 = scmp.ne.s32.totalorder %s121, %s122
      %p134 = scmp.eq.s32.totalorder %s30, 3
      %p135 = por %p133, %p134
      %p137 = scmp.ne.s32.totalorder %s122, %s136
      %p138 = scmp.eq.s32.totalorder %s30, 0
      %p139 = por %p137, %p138
      %s141 = sadd.s32 %s140, 1
      %p144 = scmp.eq.s32.totalorder %s24, 3
      %p145 = scmp.ne.s32.totalorder %s140, %s142
      %p146 = scmp.eq.s32.totalorder %s24, 0
      %p147 = por %p145, %p146
      %p148 = scmp.ne.s32.totalorder %s140, %s142
      %p149 = scmp.eq.s32.totalorder %s29, 3
      %p150 = por %p148, %p149
      %p151 = scmp.ne.s32.totalorder %s142, %s143
      %p152 = scmp.eq.s32.totalorder %s29, 0
      %p153 = por %p151, %p152
      %p154 = scmp.ne.s32.totalorder %s142, %s143
      %p155 = scmp.eq.s32.totalorder %s30, 3
      %p156 = por %p154, %p155
      %p158 = scmp.ne.s32.totalorder %s143, %s157
      %p159 = scmp.eq.s32.totalorder %s30, 0
      %p160 = por %p158, %p159
      %s162 = sadd.s32 %s161, 1
      %p165 = scmp.eq.s32.totalorder %s24, 3
      %p166 = scmp.ne.s32.totalorder %s161, %s163
      %p167 = scmp.eq.s32.totalorder %s24, 0
      %p168 = por %p166, %p167
      %p169 = scmp.ne.s32.totalorder %s161, %s163
      %p170 = scmp.eq.s32.totalorder %s29, 3
      %p171 = por %p169, %p170
      %p172 = scmp.ne.s32.totalorder %s163, %s164
      %p173 = scmp.eq.s32.totalorder %s29, 0
      %p174 = por %p172, %p173
      %p175 = scmp.ne.s32.totalorder %s163, %s164
      %p176 = scmp.eq.s32.totalorder %s30, 3
      %p177 = por %p175, %p176
      %p179 = scmp.ne.s32.totalorder %s164, %s178
      %p180 = scmp.eq.s32.totalorder %s30, 0
      %p181 = por %p179, %p180
      %s183 = sadd.s32 %s182, 1
      %p186 = scmp.eq.s32.totalorder %s24, 3
      %p187 = scmp.ne.s32.totalorder %s182, %s184
      %p188 = scmp.eq.s32.totalorder %s24, 0
      %p189 = por %p187, %p188
      %p190 = scmp.ne.s32.totalorder %s182, %s184
      %p191 = scmp.eq.s32.totalorder %s29, 3
      %p192 = por %p190, %p191
      %p193 = scmp.ne.s32.totalorder %s184, %s185
      %p194 = scmp.eq.s32.totalorder %s29, 0
      %p195 = por %p193, %p194
      %p196 = scmp.ne.s32.totalorder %s184, %s185
      %p197 = scmp.eq.s32.totalorder %s30, 3
      %p198 = por %p196, %p197
      %p200 = scmp.ne.s32.totalorder %s185, %s199
      %p201 = scmp.eq.s32.totalorder %s30, 0
      %p202 = por %p200, %p201
      %s204 = sadd.s32 %s203, 1
      %p207 = scmp.eq.s32.totalorder %s24, 3
      %p208 = scmp.ne.s32.totalorder %s203, %s205
      %p209 = scmp.eq.s32.totalorder %s24, 0
      %p210 = por %p208, %p209
      %p211 = scmp.ne.s32.totalorder %s203, %s205
      %p212 = scmp.eq.s32.totalorder %s29, 3
      %p213 = por %p211, %p212
      %p214 = scmp.ne.s32.totalorder %s205, %s206
      %p215 = scmp.eq.s32.totalorder %s29, 0
      %p216 = por %p214, %p215
      %p217 = scmp.ne.s32.totalorder %s205, %s206
      %p218 = scmp.eq.s32.totalorder %s30, 3
      %p219 = por %p217, %p218
      %p221 = scmp.ne.s32.totalorder %s206, %s220
      %p222 = scmp.eq.s32.totalorder %s30, 0
      %p223 = por %p221, %p222
      %s224 = ssub.s32 %s31, %s43
      %s225 = ssub.s32 %s32, %s39
      %s226 = sor.u32 %s224, %s225
      %p227 = scmp.eq.s32.totalorder %s226, 0
      %s229 = sadd.s32 %s228, 1
      %s230 = scalar_select %p227, %s228, %s229
      %p233 = pneg %p227
      %p234 = scmp.eq.s32.totalorder %s24, 3
      %p235 = por %p233, %p234
      %p236 = scmp.ne.s32.totalorder %s228, %s231
      %p237 = scmp.eq.s32.totalorder %s24, 0
      %p238 = por %p236, %p237
      %p239 = scmp.ne.s32.totalorder %s228, %s231
      %p240 = scmp.eq.s32.totalorder %s29, 3
      %p241 = por %p239, %p240
      %p242 = scmp.ne.s32.totalorder %s231, %s232
      %p243 = scmp.eq.s32.totalorder %s29, 0
      %p244 = por %p242, %p243
      %p245 = scmp.ne.s32.totalorder %s231, %s232
      %p246 = scmp.eq.s32.totalorder %s30, 3
      %p247 = por %p245, %p246
      %p249 = scmp.ne.s32.totalorder %s232, %s248
      %p250 = scmp.eq.s32.totalorder %s30, 0
      %p251 = por %p249, %p250
      %p252 = scmp.le.s32.totalorder 1, %s24
      %p253 = scmp.lt.s32.totalorder %s24, 5
      %p254 = pnand %p252, %p253
      %p255 = pneg %p254
      // Predicated region
      $region9: #{tpu_custom_call.1} parent=5 // pred_check
        _
      $region10: #{tpu_custom_call.1} parent=5 // pred_check_branch
        %257 = sbr.rel (%p254) target = $region12
      $region11: #{tpu_custom_call.1} parent=5 // pred_region
        %s258 = ssub.s32 %s24, 1
        // Predicated region
        $region13: #{tpu_custom_call.1} parent=11 // pred_check
          %p259 = pneg %p111
        $region14: #{tpu_custom_call.1} parent=11 // pred_check_branch
          %261 = sbr.rel (%p259) target = $region16
        $region15: #{tpu_custom_call.1} parent=11 // pred_region
          %263 = vsyncadd [#allocation8], 0
          %s264 = sshll.u32 %s2, 4
          %s265 = int_to_ptr.hbm [resolvable:$true] %s264
          %s266 = sshll.u32 [#allocation9], 4
          %s267 = int_to_ptr.vmem [resolvable:$true] %s266
          %272 = dma.hbm_to_vmem [thread:$0]  %s265, 256, %s267, [#allocation8], 64, 64, 4
        $region16: #{tpu_custom_call.1} parent=11 // pred_fallthru
          _
        // Predicated region
        $region17: #{tpu_custom_call.1} parent=11 // pred_check
          %p273 = pneg %p132
        $region18: #{tpu_custom_call.1} parent=11 // pred_check_branch
          %275 = sbr.rel (%p273) target = $region20
        $region19: #{tpu_custom_call.1} parent=11 // pred_region
          _
        $region20: #{tpu_custom_call.1} parent=11 // pred_fallthru
          _
        // Predicated region
        $region21: #{tpu_custom_call.1} parent=11 // pred_check
          %p276 = pneg %p153
        $region22: #{tpu_custom_call.1} parent=11 // pred_check_branch
          %278 = sbr.rel (%p276) target = $region24
        $region23: #{tpu_custom_call.1} parent=11 // pred_region
          %280 = vsyncadd [#allocation11], 0
          %s281 = sshll.u32 %s4, 4
          %s282 = int_to_ptr.hbm [resolvable:$true] %s281
          %s283 = sshll.u32 [#allocation10], 4
          %s284 = int_to_ptr.vmem [resolvable:$true] %s283
          %289 = dma.hbm_to_vmem [thread:$0]  %s282, 256, %s284, [#allocation11], 64, 64, 4
        $region24: #{tpu_custom_call.1} parent=11 // pred_fallthru
          _
        // Predicated region
        $region25: #{tpu_custom_call.1} parent=11 // pred_check
          %p290 = pneg %p174
        $region26: #{tpu_custom_call.1} parent=11 // pred_check_branch
          %292 = sbr.rel (%p290) target = $region28
        $region27: #{tpu_custom_call.1} parent=11 // pred_region
          _
        $region28: #{tpu_custom_call.1} parent=11 // pred_fallthru
          _
        // Predicated region
        $region29: #{tpu_custom_call.1} parent=11 // pred_check
          %p293 = pneg %p195
        $region30: #{tpu_custom_call.1} parent=11 // pred_check_branch
          %295 = sbr.rel (%p293) target = $region32
        $region31: #{tpu_custom_call.1} parent=11 // pred_region
          %297 = vsyncadd [#allocation11], 0
          %s298 = sshll.u32 %s6, 4
          %s299 = int_to_ptr.hbm [resolvable:$true] %s298
          %s300 = sshll.u32 [#allocation12], 4
          %s301 = int_to_ptr.vmem [resolvable:$true] %s300
          %306 = dma.hbm_to_vmem [thread:$0]  %s299, 256, %s301, [#allocation11], 64, 64, 4
        $region32: #{tpu_custom_call.1} parent=11 // pred_fallthru
          _
        // Predicated region
        $region33: #{tpu_custom_call.1} parent=11 // pred_check
          %p307 = pneg %p216
        $region34: #{tpu_custom_call.1} parent=11 // pred_check_branch
          %309 = sbr.rel (%p307) target = $region36
        $region35: #{tpu_custom_call.1} parent=11 // pred_region
          _
        $region36: #{tpu_custom_call.1} parent=11 // pred_fallthru
          _
      $region12: #{tpu_custom_call.1} parent=5 // pred_fallthru
        _
      %p310 = scmp.lt.s32.totalorder %s24, 4
      // Predicated region
      $region37: #{tpu_custom_call.1} parent=5 // pred_check
        %p311 = pneg %p310
      $region38: #{tpu_custom_call.1} parent=5 // pred_check_branch
        %313 = sbr.rel (%p311) target = $region40
      $region39: #{tpu_custom_call.1} parent=5 // pred_region
        // Predicated region
        $region41: #{tpu_custom_call.1} parent=39 // pred_check
          %p314 = pneg %p58
        $region42: #{tpu_custom_call.1} parent=39 // pred_check_branch
          %316 = sbr.rel (%p314) target = $region44
        $region43: #{tpu_custom_call.1} parent=39 // pred_region
          %s317 = sand.u32 %s48, 1
          %s318 = scalar_lea.sflag [#allocation5], %s317
          %s319 = sand.u32 %s48, 1
          %s320 = smul.addr %s319, 4
          %s321 = scalar_lea.vmem [#allocation4], %s320
          %323 = vsyncadd %s318, 0
          %s324 = smul.addr %s31, 2
          %s325 = sadd.s32 %s32, %s324
          %s326 = smul.addr %s325, 4
          %s327 = scalar_lea.hbm %s0, %s326
          %s329 = sshll.u32 %s327, 4
          %s330 = int_to_ptr.hbm [resolvable:$true] %s329
          %s331 = sshll.u32 %s321, 4
          %s332 = int_to_ptr.vmem [resolvable:$true] %s331
          %334 = dma.hbm_to_vmem [thread:$0]  %s330, 64, %s332, %s318
        $region44: #{tpu_custom_call.1} parent=39 // pred_fallthru
          _
        // Predicated region
        $region45: #{tpu_custom_call.1} parent=39 // pred_check
          %p335 = pneg %p84
        $region46: #{tpu_custom_call.1} parent=39 // pred_check_branch
          %337 = sbr.rel (%p335) target = $region48
        $region47: #{tpu_custom_call.1} parent=39 // pred_region
          %s338 = sand.u32 %s24, 1
          %s339 = scalar_lea.sflag [#allocation8], %s338
          %s340 = sand.u32 %s74, 1
          %s341 = smul.addr %s340, 8
          %s342 = scalar_lea.vmem [#allocation7], %s341
          %344 = vsyncadd %s339, 0
          %s345 = smul.addr %s31, 2
          %s346 = smul.addr %s345, 4
          %s347 = scalar_lea.hbm %s1, %s346
          %s348 = sshll.u32 %s347, 4
          %s349 = int_to_ptr.hbm [resolvable:$true] %s348
          %s350 = sshll.u32 %s342, 4
          %s351 = int_to_ptr.vmem [resolvable:$true] %s350
          %356 = dma.hbm_to_vmem [thread:$0]  %s349, 128, %s351, %s339, 64, 64, 4
        $region48: #{tpu_custom_call.1} parent=39 // pred_fallthru
          _
      $region40: #{tpu_custom_call.1} parent=5 // pred_fallthru
        _
      %p357 = scmp.le.s32.totalorder 1, %s24
      %p358 = scmp.lt.s32.totalorder %s24, 5
      %p359 = pnand %p357, %p358
      %p360 = pneg %p359
      // Predicated region
      $region49: #{tpu_custom_call.1} parent=5 // pred_check
        _
      $region50: #{tpu_custom_call.1} parent=5 // pred_check_branch
        %362 = sbr.rel (%p359) target = $region52
      $region51: #{tpu_custom_call.1} parent=5 // pred_region
        %s363 = ssub.s32 %s24, 1
        %s364 = sand.u32 %s51, 1
        %s365 = scalar_lea.sflag [#allocation5], %s364
        %s366 = sand.u32 %s51, 1
        %s367 = smul.addr %s366, 4
        %s368 = scalar_lea.vmem [#allocation4], %s367
        // Predicated region
        $region53: #{tpu_custom_call.1} parent=51 // pred_check
          %p369 = pneg %p64
        $region54: #{tpu_custom_call.1} parent=51 // pred_check_branch
          %371 = sbr.rel (%p369) target = $region56
        $region55: #{tpu_custom_call.1} parent=51 // pred_region
          %373 = dma.done %s365, 64
        $region56: #{tpu_custom_call.1} parent=51 // pred_fallthru
          _
        %s374 = sand.u32 %s29, 1
        %s375 = scalar_lea.sflag [#allocation8], %s374
        %s376 = sand.u32 %s77, 1
        %s377 = smul.addr %s376, 8
        %s378 = scalar_lea.vmem [#allocation7], %s377
        // Predicated region
        $region57: #{tpu_custom_call.1} parent=51 // pred_check
          %p379 = pneg %p90
        $region58: #{tpu_custom_call.1} parent=51 // pred_check_branch
          %381 = sbr.rel (%p379) target = $region60
        $region59: #{tpu_custom_call.1} parent=51 // pred_region
          %383 = dma.done %s375, 128
        $region60: #{tpu_custom_call.1} parent=51 // pred_fallthru
          _
        // Predicated region
        $region61: #{tpu_custom_call.1} parent=51 // pred_check
          %p384 = pneg %p111
        $region62: #{tpu_custom_call.1} parent=51 // pred_check_branch
          %386 = sbr.rel (%p384) target = $region64
        $region63: #{tpu_custom_call.1} parent=51 // pred_region
          %388 = dma.done [#allocation8], 256
        $region64: #{tpu_custom_call.1} parent=51 // pred_fallthru
          _
        // Predicated region
        $region65: #{tpu_custom_call.1} parent=51 // pred_check
          %p389 = pneg %p153
        $region66: #{tpu_custom_call.1} parent=51 // pred_check_branch
          %391 = sbr.rel (%p389) target = $region68
        $region67: #{tpu_custom_call.1} parent=51 // pred_region
          %393 = dma.done [#allocation11], 256
        $region68: #{tpu_custom_call.1} parent=51 // pred_fallthru
          _
        // Predicated region
        $region69: #{tpu_custom_call.1} parent=51 // pred_check
          %p394 = pneg %p195
        $region70: #{tpu_custom_call.1} parent=51 // pred_check_branch
          %396 = sbr.rel (%p394) target = $region72
        $region71: #{tpu_custom_call.1} parent=51 // pred_region
          %398 = dma.done [#allocation11], 256
        $region72: #{tpu_custom_call.1} parent=51 // pred_fallthru
          _
        %s399 = sand.u32 %s51, 1
        %s400 = scalar_lea.sflag [#allocation5], %s399
        %s401 = sand.u32 %s51, 1
        %s402 = smul.addr %s401, 4
        %s403 = scalar_lea.vmem [#allocation4], %s402
        %p404 = pneg %p64
        %p405 = pneg %p61
        %s406 = sand.u32 %s29, 1
        %s407 = scalar_lea.sflag [#allocation8], %s406
        %s408 = sand.u32 %s77, 1
        %s409 = smul.addr %s408, 8
        %s410 = scalar_lea.vmem [#allocation7], %s409
        %p411 = pneg %p90
        %p412 = pneg %p87
        %p413 = pneg %p111
        %p414 = pneg %p108
        %p415 = pneg %p132
        %p416 = pneg %p129
        %p417 = pneg %p153
        %p418 = pneg %p150
        %p419 = pneg %p174
        %p420 = pneg %p171
        %p421 = pneg %p195
        %p422 = pneg %p192
        %p423 = pneg %p216
        %p424 = pneg %p213
        %p425 = pneg %p244
        %p426 = pneg %p241
        %s427 = sand.u32 %s231, 1
        %s428 = scalar_lea.sflag [#allocation6], %s427
        %s429 = sand.u32 %s231, 1
        %s430 = smul.addr %s429, 8
        %s431 = scalar_lea.vmem [#allocation13], %s430
        %p433 = scmp.eq.s32.totalorder %s34, 0
        // Predicated region
        $region73: #{tpu_custom_call.1} parent=51 // pred_check
          %p434 = pneg %p433
        $region74: #{tpu_custom_call.1} parent=51 // pred_check_branch
          %436 = sbr.rel (%p434) target = $region76
        $region75: #{tpu_custom_call.1} parent=51 // pred_region
          %v437 = vld [vmem:[%s378] sm:$0xf]
          %v438 = vld [vmem:[%s378 + $0x4] sm:$0xf]
          %v439 = vld [vmem:[#allocation10] sm:$0xf]
          %v440 = vld [vmem:[#allocation10 + $0x4] sm:$0xf]
          %v441 = vld [vmem:[#allocation10 + $0x8] sm:$0xf]
          %v442 = vld [vmem:[#allocation10 + $0xc] sm:$0xf]
          %v443 = vld [vmem:[%s5] sm:$0x1]
          %v445 = vperm.slane %v443, 0
          %v449 = vunpack.c.l.b16 %v437
          %v450 = vunpack.c.l.b16 %v438
          %v451 = vpack.c.b16 %v450, %v449
          %v456 = vunpack.c.l.b16 %v439
          %v457 = vunpack.c.l.b16 %v440
          %v458 = vunpack.c.l.b16 %v441
          %v459 = vunpack.c.l.b16 %v442
          %v460 = vpack.c.b16 %v457, %v456
          %v461 = vpack.c.b16 %v459, %v458
          %vm464 = vcmask 261120
          %v466 = vsel %vm464, %v451, 0
          %468 = vmatpush.bf16.msra.mxu0 0
          %469 = vmatpush.bf16.msra.mxu0 0
          %470 = vmatpush.bf16.msra.mxu0 0
          %471 = vmatpush.bf16.msra.mxu0 0
          %472 = vmatpush.bf16.msra.mxu0 0
          %473 = vmatpush.bf16.msra.mxu0 0
          %474 = vmatpush.bf16.msra.mxu0 %v461
          %475 = vmatpush.bf16.msra.mxu0 %v460
          %476 = vmatmul.bf16.gmra.mxu0 %v466
          %v477 = vpop.f32.mrf.mxu0
          %v478 = vadd.f32 %v445, %v477
          %v479 = vpop.f32.mrf.mxu0
          %v480 = vadd.f32 %v445, %v479
          %481 = vdwg.mxu0
          %v482 = vpack.c.bf16 %v478, %v478
          %v483 = vpack.c.bf16 %v480, %v480
          %vm484 = vcmask 519168
          %485 = vst.msk [vmem:[#allocation2] sm:$0xf] %vm484, %v482
          %486 = vst.msk [vmem:[#allocation2 + $0x4] sm:$0xf] %vm484, %v483
        $region76: #{tpu_custom_call.1} parent=51 // pred_fallthru
          _
        %v487 = vld [vmem:[%s368] sm:$0xf]
        %v488 = vld [vmem:[#allocation9] sm:$0xf]
        %v489 = vld [vmem:[#allocation9 + $0x4] sm:$0xf]
        %v490 = vld [vmem:[#allocation9 + $0x8] sm:$0xf]
        %v491 = vld [vmem:[#allocation9 + $0xc] sm:$0xf]
        %v492 = vld [vmem:[%s3] sm:$0x1]
        %v494 = vperm.slane %v492, 0
        %v500 = vunpack.c.l.b16 %v488
        %v501 = vunpack.c.l.b16 %v489
        %v502 = vunpack.c.l.b16 %v490
        %v503 = vunpack.c.l.b16 %v491
        %v504 = vpack.c.b16 %v501, %v500
        %v505 = vpack.c.b16 %v503, %v502
        %vm508 = vcmask 261120
        %v510 = vsel %vm508, %v487, 0
        %512 = vmatpush.bf16.msra.mxu0 0
        %513 = vmatpush.bf16.msra.mxu0 0
        %514 = vmatpush.bf16.msra.mxu0 0
        %515 = vmatpush.bf16.msra.mxu0 0
        %516 = vmatpush.bf16.msra.mxu0 0
        %517 = vmatpush.bf16.msra.mxu0 0
        %518 = vmatpush.bf16.msra.mxu0 %v505
        %519 = vmatpush.bf16.msra.mxu0 %v504
        %520 = vmatmul.bf16.gmra.mxu0 %v510
        %v521 = vpop.f32.mrf.mxu0
        %v522 = vadd.f32 %v494, %v521
        %v523 = vpop.f32.mrf.mxu0
        %524 = vdwg.mxu0
        %v525 = vpack.c.bf16 %v522, %v522
        %v526 = vld [vmem:[#allocation2] sm:$0xf]
        %v527 = vld [vmem:[#allocation2 + $0x4] sm:$0xf]
        %v530 = vunpack.c.l.b16 %v526
        %v531 = vunpack.c.l.b16 %v527
        %v532 = vpack.c.b16 %v531, %v530
        %vm533 = vcmask 64512
        %v535 = vsel %vm533, %v525, 0
        %v538 = vsel %vm533, %v532, 0
        %540 = vmatpush.bf16.xpose.msra.mxu0 0
        %541 = vmatpush.bf16.xpose.msra.mxu0 0
        %542 = vmatpush.bf16.xpose.msra.mxu0 0
        %543 = vmatpush.bf16.xpose.msra.mxu0 0
        %544 = vmatpush.bf16.xpose.msra.mxu0 0
        %545 = vmatpush.bf16.xpose.msra.mxu0 0
        %546 = vmatpush.bf16.xpose.msra.mxu0 0
        %547 = vmatpush.bf16.xpose.msra.mxu0 %v538
        %548 = vmatmul.bf16.gmra.mxu0 %v535
        %v549 = vpop.f32.mrf.mxu0
        %v550 = vadd.f32 0.0, %v549
        %v551 = vpop.f32.mrf.mxu0
        %552 = vdwg.mxu0
        %vm553 = vcmask 130048
        %v554 = vsel %vm553, %v550, -inf
        %555 = vmax.xlane.f32.xlu0 %v554
        %v556 = vpop.xlane.xlu0 %555
        %v557 = vsub.f32 %v550, %v556
        %v558 = vmul.f32 %v557, 1.442695
        %v559 = vpow.pop %v558
        %v560 = vsel %vm553, %v559, 0.0
        %561 = vadd.xlane.f32.xlu0 %v560
        %v562 = vpop.xlane.xlu0 %561
        %v563 = vrcp.pop %v562
        %v564 = vmul.f32 %v559, %v563
        %v565 = vpack.c.bf16 %v564, %v564
        %566 = vrot.lane.b32.xlu0 %v532, 96
        %v567 = vpop.permute.xlu0 %566
        %v570 = vsel %vm553, %v565, 0
        %572 = vmatpush.bf16.msra.mxu0 0
        %573 = vmatpush.bf16.msra.mxu0 0
        %574 = vmatpush.bf16.msra.mxu0 0
        %575 = vmatpush.bf16.msra.mxu0 0
        %576 = vmatpush.bf16.msra.mxu0 0
        %577 = vmatpush.bf16.msra.mxu0 0
        %578 = vmatpush.bf16.msra.mxu0 0
        %579 = vmatpush.bf16.msra.mxu0 %v567
        %580 = vmatmul.bf16.gmra.mxu0 %v570
        %v581 = vpop.f32.mrf.mxu0
        %v582 = vadd.f32 0.0, %v581
        %v583 = vpop.f32.mrf.mxu0
        %584 = vdwg.mxu0
        %v585 = vpack.c.bf16 %v582, %v582
        %vm586 = vcmask 60416
        %587 = vst.msk [vmem:[#allocation3] sm:$0xf] %vm586, %v585
        %v589 = vunpack.c.l.b16 %v525
        %v590 = vpack.c.b16 %v589, %v589
        %591 = vrot.lane.b32.xlu0 %v590, 120
        %v592 = vpop.permute.xlu0 %591
        %593 = vrot.lane.b32.xlu0 %v532, 120
        %v594 = vpop.permute.xlu0 %593
        %v596 = vsel %vm533, %v592, 0
        %v599 = vsel %vm533, %v594, 0
        %601 = vmatpush.bf16.xpose.msra.mxu0 0
        %602 = vmatpush.bf16.xpose.msra.mxu0 0
        %603 = vmatpush.bf16.xpose.msra.mxu0 0
        %604 = vmatpush.bf16.xpose.msra.mxu0 0
        %605 = vmatpush.bf16.xpose.msra.mxu0 0
        %606 = vmatpush.bf16.xpose.msra.mxu0 0
        %607 = vmatpush.bf16.xpose.msra.mxu0 0
        %608 = vmatpush.bf16.xpose.msra.mxu0 %v599
        %609 = vmatmul.bf16.gmra.mxu0 %v596
        %v610 = vpop.f32.mrf.mxu0
        %v611 = vadd.f32 0.0, %v610
        %v612 = vpop.f32.mrf.mxu0
        %613 = vdwg.mxu0
        %v614 = vsel %vm553, %v611, -inf
        %615 = vmax.xlane.f32.xlu0 %v614
        %v616 = vpop.xlane.xlu0 %615
        %v617 = vsub.f32 %v611, %v616
        %v618 = vmul.f32 %v617, 1.442695
        %v619 = vpow.pop %v618
        %v620 = vsel %vm553, %v619, 0.0
        %621 = vadd.xlane.f32.xlu0 %v620
        %v622 = vpop.xlane.xlu0 %621
        %v623 = vrcp.pop %v622
        %v624 = vmul.f32 %v619, %v623
        %v625 = vpack.c.bf16 %v624, %v624
        %626 = vrot.lane.b32.xlu0 %v532, 88
        %v627 = vpop.permute.xlu0 %626
        %v630 = vsel %vm553, %v625, 0
        %632 = vmatpush.bf16.msra.mxu0 0
        %633 = vmatpush.bf16.msra.mxu0 0
        %634 = vmatpush.bf16.msra.mxu0 0
        %635 = vmatpush.bf16.msra.mxu0 0
        %636 = vmatpush.bf16.msra.mxu0 0
        %637 = vmatpush.bf16.msra.mxu0 0
        %638 = vmatpush.bf16.msra.mxu0 0
        %639 = vmatpush.bf16.msra.mxu0 %v627
        %640 = vmatmul.bf16.gmra.mxu0 %v630
        %v641 = vpop.f32.mrf.mxu0
        %v642 = vadd.f32 0.0, %v641
        %v643 = vpop.f32.mrf.mxu0
        %644 = vdwg.mxu0
        %v645 = vpack.c.bf16 %v642, %v642
        %647 = vrot.lane.b32.xlu0 %v645, 8
        %v648 = vpop.permute.xlu0 %647
        %vm650 = vcmask 126016
        %651 = vst.msk [vmem:[#allocation3] sm:$0xf] %vm650, %v648
        %652 = vrot.lane.b32.xlu0 %v590, 112
        %v653 = vpop.permute.xlu0 %652
        %654 = vrot.lane.b32.xlu0 %v532, 112
        %v655 = vpop.permute.xlu0 %654
        %v657 = vsel %vm533, %v653, 0
        %v660 = vsel %vm533, %v655, 0
        %662 = vmatpush.bf16.xpose.msra.mxu0 0
        %663 = vmatpush.bf16.xpose.msra.mxu0 0
        %664 = vmatpush.bf16.xpose.msra.mxu0 0
        %665 = vmatpush.bf16.xpose.msra.mxu0 0
        %666 = vmatpush.bf16.xpose.msra.mxu0 0
        %667 = vmatpush.bf16.xpose.msra.mxu0 0
        %668 = vmatpush.bf16.xpose.msra.mxu0 0
        %669 = vmatpush.bf16.xpose.msra.mxu0 %v660
        %670 = vmatmul.bf16.gmra.mxu0 %v657
        %v671 = vpop.f32.mrf.mxu0
        %v672 = vadd.f32 0.0, %v671
        %v673 = vpop.f32.mrf.mxu0
        %674 = vdwg.mxu0
        %v675 = vsel %vm553, %v672, -inf
        %676 = vmax.xlane.f32.xlu0 %v675
        %v677 = vpop.xlane.xlu0 %676
        %v678 = vsub.f32 %v672, %v677
        %v679 = vmul.f32 %v678, 1.442695
        %v680 = vpow.pop %v679
        %v681 = vsel %vm553, %v680, 0.0
        %682 = vadd.xlane.f32.xlu0 %v681
        %v683 = vpop.xlane.xlu0 %682
        %v684 = vrcp.pop %v683
        %v685 = vmul.f32 %v680, %v684
        %v686 = vpack.c.bf16 %v685, %v685
        %687 = vrot.lane.b32.xlu0 %v532, 80
        %v688 = vpop.permute.xlu0 %687
        %v691 = vsel %vm553, %v686, 0
        %693 = vmatpush.bf16.msra.mxu0 0
        %694 = vmatpush.bf16.msra.mxu0 0
        %695 = vmatpush.bf16.msra.mxu0 0
        %696 = vmatpush.bf16.msra.mxu0 0
        %697 = vmatpush.bf16.msra.mxu0 0
        %698 = vmatpush.bf16.msra.mxu0 0
        %699 = vmatpush.bf16.msra.mxu0 0
        %700 = vmatpush.bf16.msra.mxu0 %v688
        %701 = vmatmul.bf16.gmra.mxu0 %v691
        %v702 = vpop.f32.mrf.mxu0
        %v703 = vadd.f32 0.0, %v702
        %v704 = vpop.f32.mrf.mxu0
        %705 = vdwg.mxu0
        %v706 = vpack.c.bf16 %v703, %v703
        %708 = vrot.lane.b32.xlu0 %v706, 16
        %v709 = vpop.permute.xlu0 %708
        %vm711 = vcmask 191616
        %712 = vst.msk [vmem:[#allocation3] sm:$0xf] %vm711, %v709
        %713 = vrot.lane.b32.xlu0 %v590, 104
        %v714 = vpop.permute.xlu0 %713
        %715 = vrot.lane.b32.xlu0 %v532, 104
        %v716 = vpop.permute.xlu0 %715
        %v718 = vsel %vm533, %v714, 0
        %v721 = vsel %vm533, %v716, 0
        %723 = vmatpush.bf16.xpose.msra.mxu0 0
        %724 = vmatpush.bf16.xpose.msra.mxu0 0
        %725 = vmatpush.bf16.xpose.msra.mxu0 0
        %726 = vmatpush.bf16.xpose.msra.mxu0 0
        %727 = vmatpush.bf16.xpose.msra.mxu0 0
        %728 = vmatpush.bf16.xpose.msra.mxu0 0
        %729 = vmatpush.bf16.xpose.msra.mxu0 0
        %730 = vmatpush.bf16.xpose.msra.mxu0 %v721
        %731 = vmatmul.bf16.gmra.mxu0 %v718
        %v732 = vpop.f32.mrf.mxu0
        %v733 = vadd.f32 0.0, %v732
        %v734 = vpop.f32.mrf.mxu0
        %735 = vdwg.mxu0
        %v736 = vsel %vm553, %v733, -inf
        %737 = vmax.xlane.f32.xlu0 %v736
        %v738 = vpop.xlane.xlu0 %737
        %v739 = vsub.f32 %v733, %v738
        %v740 = vmul.f32 %v739, 1.442695
        %v741 = vpow.pop %v740
        %v742 = vsel %vm553, %v741, 0.0
        %743 = vadd.xlane.f32.xlu0 %v742
        %v744 = vpop.xlane.xlu0 %743
        %v745 = vrcp.pop %v744
        %v746 = vmul.f32 %v741, %v745
        %v747 = vpack.c.bf16 %v746, %v746
        %748 = vrot.lane.b32.xlu0 %v532, 72
        %v749 = vpop.permute.xlu0 %748
        %v752 = vsel %vm553, %v747, 0
        %754 = vmatpush.bf16.msra.mxu0 0
        %755 = vmatpush.bf16.msra.mxu0 0
        %756 = vmatpush.bf16.msra.mxu0 0
        %757 = vmatpush.bf16.msra.mxu0 0
        %758 = vmatpush.bf16.msra.mxu0 0
        %759 = vmatpush.bf16.msra.mxu0 0
        %760 = vmatpush.bf16.msra.mxu0 0
        %761 = vmatpush.bf16.msra.mxu0 %v749
        %762 = vmatmul.bf16.gmra.mxu0 %v752
        %v763 = vpop.f32.mrf.mxu0
        %v764 = vadd.f32 0.0, %v763
        %v765 = vpop.f32.mrf.mxu0
        %766 = vdwg.mxu0
        %v767 = vpack.c.bf16 %v764, %v764
        %769 = vrot.lane.b32.xlu0 %v767, 24
        %v770 = vpop.permute.xlu0 %769
        %vm772 = vcmask 257216
        %773 = vst.msk [vmem:[#allocation3] sm:$0xf] %vm772, %v770
        %v774 = vld [vmem:[#allocation3] sm:$0xf]
        %v775 = vld [vmem:[#allocation12] sm:$0xf]
        %v776 = vld [vmem:[#allocation12 + $0x4] sm:$0xf]
        %v777 = vld [vmem:[#allocation12 + $0x8] sm:$0xf]
        %v778 = vld [vmem:[#allocation12 + $0xc] sm:$0xf]
        %v779 = vld [vmem:[%s7] sm:$0x1]
        %v781 = vperm.slane %v779, 0
        %v787 = vunpack.c.l.b16 %v775
        %v788 = vunpack.c.l.b16 %v776
        %v789 = vunpack.c.l.b16 %v777
        %v790 = vunpack.c.l.b16 %v778
        %v791 = vpack.c.b16 %v788, %v787
        %v792 = vpack.c.b16 %v790, %v789
        %v796 = vsel %vm508, %v774, 0
        %798 = vmatpush.bf16.msra.mxu0 0
        %799 = vmatpush.bf16.msra.mxu0 0
        %800 = vmatpush.bf16.msra.mxu0 0
        %801 = vmatpush.bf16.msra.mxu0 0
        %802 = vmatpush.bf16.msra.mxu0 0
        %803 = vmatpush.bf16.msra.mxu0 0
        %804 = vmatpush.bf16.msra.mxu0 %v792
        %805 = vmatpush.bf16.msra.mxu0 %v791
        %806 = vmatmul.bf16.gmra.mxu0 %v796
        %v807 = vpop.f32.mrf.mxu0
        %v808 = vadd.f32 %v781, %v807
        %v809 = vpop.f32.mrf.mxu0
        %810 = vdwg.mxu0
        %811 = vst.msk [vmem:[%s431] sm:$0xff] %vm508, %v808
        %s812 = sand.u32 %s231, 1
        %s813 = scalar_lea.sflag [#allocation6], %s812
        %s814 = sand.u32 %s231, 1
        %s815 = smul.addr %s814, 8
        %s816 = scalar_lea.vmem [#allocation13], %s815
        // Predicated region
        $region77: #{tpu_custom_call.1} parent=51 // pred_check
          %p817 = pneg %p241
        $region78: #{tpu_custom_call.1} parent=51 // pred_check_branch
          %819 = sbr.rel (%p817) target = $region80
        $region79: #{tpu_custom_call.1} parent=51 // pred_region
          %821 = vsyncadd %s813, 0
          %s822 = smul.addr %s33, 2
          %s823 = sadd.s32 %s34, %s822
          %s824 = smul.addr %s823, 8
          %s825 = scalar_lea.hbm %s8, %s824
          %s827 = sshll.u32 %s816, 4
          %s828 = int_to_ptr.vmem [resolvable:$true] %s827
          %s829 = sshll.u32 %s825, 4
          %s830 = int_to_ptr.hbm [resolvable:$true] %s829
          %832 = dma.vmem_to_hbm [thread:$0]  %s828, 128, %s830, %s813
        $region80: #{tpu_custom_call.1} parent=51 // pred_fallthru
          _
      $region52: #{tpu_custom_call.1} parent=5 // pred_fallthru
        _
      %p833 = scmp.le.s32.totalorder 2, %s24
      // Predicated region
      $region81: #{tpu_custom_call.1} parent=5 // pred_check
        %p834 = pneg %p833
      $region82: #{tpu_custom_call.1} parent=5 // pred_check_branch
        %836 = sbr.rel (%p834) target = $region84
      $region83: #{tpu_custom_call.1} parent=5 // pred_region
        %s837 = ssub.s32 %s24, 2
        // Predicated region
        $region85: #{tpu_custom_call.1} parent=83 // pred_check
          %p838 = pneg %p247
        $region86: #{tpu_custom_call.1} parent=83 // pred_check_branch
          %840 = sbr.rel (%p838) target = $region88
        $region87: #{tpu_custom_call.1} parent=83 // pred_region
          %s841 = sand.u32 %s232, 1
          %s842 = scalar_lea.sflag [#allocation6], %s841
          %s843 = sand.u32 %s232, 1
          %s844 = smul.addr %s843, 8
          %s845 = scalar_lea.vmem [#allocation13], %s844
          %847 = dma.done %s842, 128
        $region88: #{tpu_custom_call.1} parent=83 // pred_fallthru
          _
      $region84: #{tpu_custom_call.1} parent=5 // pred_fallthru
        _
    $region6: #{tpu_custom_call.1} parent=1 // loop_footer
      %s28 = sadd.s32 1, %s24
    $region7: #{tpu_custom_call.1} parent=1 // loop_footer_branch
      %23 = sbr.rel target = $region3
    $region8: #{tpu_custom_call.1} parent=1 // loop_exit
      _
    %848 = vsyncpa [#allocation5], 1
    %s849 = scalar_lea.sflag [#allocation5], 1
    %850 = vsyncpa %s849, 1
    %851 = vsyncpa [#allocation8], 1
    %s852 = scalar_lea.sflag [#allocation8], 1
    %853 = vsyncpa %s852, 1
    %854 = vsyncpa [#allocation11], 1
    %855 = vsyncpa [#allocation6], 1
    %s856 = scalar_lea.sflag [#allocation6], 1
    %857 = vsyncpa %s856, 1

</llo_original>
